<compile_context>
chip_gen: v5e
topology: v5e:2x2
jax: 0.10.0
libtpu: 0.0.40
codegen_flags: <defaults>
</compile_context>

<pallas_src>
import functools

import jax
import jax.numpy as jnp
from jax.experimental import pallas as pl
from jax.experimental.pallas import tpu as pltpu


# ----------------------------------------------------------------------------
# Pallas kernel: per-block (BB bags) aggregation + classification head
# ----------------------------------------------------------------------------
def bag_head_kernel(full_ref, mask_ref, pen_ref, w_ref, b_ref, logp_ref, *,
                    use_mxu):
    # Block shapes (per grid step, BB bags):
    #   full_ref : (BB, S, L, H)  bf16/f32  BERT sequence output
    #   mask_ref : (2, BB, S, L)  same dt   entity-1 / entity-2 token masks
    #   pen_ref  : (BB, S, 1)     f32       precomputed (1 - sentence_mask) * -1e8
    #   w_ref    : (2H, CP)       f32       fc_class.weight.T, lane-padded to CP
    #   b_ref    : (1, CP)        f32       fc_class bias (padded lanes hold -1e9)
    #   logp_ref : (BB, CP)       f32       log_softmax output (padded lanes junk)
    BB, S, L, H = full_ref.shape
    inv_L = 1.0 / L

    full = full_ref[...]                          # (BB, S, L, H)
    masks = mask_ref[...]                         # (2, BB, S, L)
    m1, m2 = masks[0], masks[1]                   # leading-dim slices, contiguous

    # PyTorch: (full_output * mask).mean(dim=-2) for e1 and e2 (divides by L,
    # not the mask count — matches torch).
    if use_mxu:
        # BERT scale: batched MXU contraction over L, f32 accumulation.
        avg1 = jnp.einsum("bsl,bslh->bsh", m1, full,
                          preferred_element_type=jnp.float32) * inv_L
        avg2 = jnp.einsum("bsl,bslh->bsh", m2, full,
                          preferred_element_type=jnp.float32) * inv_L
    else:
        # Tiny shapes (demo): VPU broadcast-multiply + sublane reduction over L;
        # avoids degenerate M=1 MXU tiles and their relayouts.
        f = full.astype(jnp.float32)
        avg1 = jnp.sum(m1.astype(jnp.float32)[..., None] * f, axis=2) * inv_L
        avg2 = jnp.sum(m2.astype(jnp.float32)[..., None] * f, axis=2) * inv_L

    # rel_rep += (1 - sentence_mask) * -1e8 ; max over sentences.  The penalty
    # broadcasts over features, so max(concat) == concat(max): keep the e1/e2
    # halves separate and split the fc_class matmul accordingly (no concat,
    # no size-2 sublane dim anywhere).
    pen = pen_ref[...]                            # (BB, S, 1) f32
    r1 = jnp.max(avg1 + pen, axis=1)              # (BB, H)
    r2 = jnp.max(avg2 + pen, axis=1)              # (BB, H)

    # fc_class: logits = [r1, r2] @ W_t + b   (W_t is (2H, CP), resident in VMEM)
    logits = (jnp.dot(r1, w_ref[0:H, :], preferred_element_type=jnp.float32)
              + jnp.dot(r2, w_ref[H:, :], preferred_element_type=jnp.float32)
              + b_ref[...])                       # (BB, CP)

    # LogSoftmax(dim=-1), all f32.
    mx = jnp.max(logits, axis=-1, keepdims=True)
    shifted = logits - mx
    denom = jnp.sum(jnp.exp(shifted), axis=-1, keepdims=True)
    logp_ref[...] = shifted - jnp.log(denom)


# ----------------------------------------------------------------------------
# Wrapper: block sizing, VMEM budget, pallas_call
# ----------------------------------------------------------------------------
def _vmem_budget_bytes():
    """Scoped-VMEM budget with headroom: ~96 MiB on v5e/v6e (128 MiB physical),
    ~48 MiB on v7x (64 MiB per-TC physical)."""
    try:
        cap = int(pltpu.get_tpu_info().vmem_capacity_bytes)
    except Exception:
        cap = 64 * 1024 * 1024            # assume the smallest (v7x) if unknown
    return max(32 * 1024 * 1024, (cap * 3) // 4)


def _pick_bag_block(B, S, L, H, itemsize, budget):
    # >= 8 grid steps so each of v7x's 2 TensorCores still sees >= 4 pipelined
    # steps (double-buffering only hides DMA with multiple steps per core); on
    # v5e/v6e (single TC) this just yields a deeper, well-pipelined grid.
    bb = max(1, B // 8)
    while B % bb:
        bb -= 1

    def stream_bytes(b):                  # double-buffered full + mask blocks
        return 2 * (b * S * L * H + 2 * b * S * L) * itemsize

    while bb > 1 and stream_bytes(bb) > budget - (8 << 20):
        nb = bb // 2
        while B % nb:
            nb -= 1
        bb = nb
    return bb


def bag_attention_head(full_output, e1_mask, e2_mask, sentence_mask, w_cls_t,
                       b_cls, *, bag_block=None):
    """full_output: (B, S, L, H) — pass it in bf16 (cast fused into the encoder
    epilogue) so the HBM-bound head reads the big tensor exactly once; no cast
    happens here.  e*_mask: (B, S, L); sentence_mask: (B, S);
    w_cls_t: (2H, C) == fc_class.weight.T; b_cls: (C,).
    Returns (log_softmax, softmax), each (B, C)."""
    B, S, L, H = full_output.shape
    C = w_cls_t.shape[1]
    CP = ((C + 127) // 128) * 128          # lane-dense, unmasked output stores

    budget = _vmem_budget_bytes()
    itemsize = jnp.dtype(full_output.dtype).itemsize
    BB = bag_block if bag_block is not None else _pick_bag_block(
        B, S, L, H, itemsize, budget)
    if B % BB:
        raise ValueError("batch must be divisible by the bag block")
    G = B // BB                            # grid depth (>= 8 when auto-sized)

    # Entity-major mask stream: size-2 dim leads (tile count, not sublane slot).
    # Masks are 0/1 so the cast to the activation dtype is exact; the tensor is
    # H-times smaller than full_output, so its traffic is negligible.
    masks = jnp.stack([e1_mask, e2_mask], axis=0).astype(full_output.dtype)

    # Sentence penalty precomputed once in the wrapper; (B, S, 1) keeps the
    # per-block footprint to one (8,128) tile per bag instead of per element.
    pen = ((1.0 - sentence_mask.astype(jnp.float32)) * (-100000000.0))[..., None]

    w_pad = jnp.zeros((2 * H, CP), jnp.float32).at[:, :C].set(
        w_cls_t.astype(jnp.float32))
    b_pad = jnp.full((1, CP), -1e9, jnp.float32).at[0, :C].set(
        b_cls.astype(jnp.float32))

    use_mxu = L >= 128                     # toy L/H -> VPU path (see kernel)

    # NOTE: at toy H (=32) the full-tensor loads use 32/128 lanes; at real BERT
    # (H=768) this is moot, and folding (L,H) into the lane dim would cost an
    # in-kernel relayout, so it is intentionally not done.
    # If DMA ever shows up exposed despite the >=4 steps/core grid, add
    # pipeline_mode=pl.Buffered(3) on the first two in_specs.
    grid_spec = pltpu.PrefetchScalarGridSpec(
        num_scalar_prefetch=0,
        grid=(G,),
        in_specs=[
            pl.BlockSpec((BB, S, L, H), lambda i: (i, 0, 0, 0)),
            pl.BlockSpec((2, BB, S, L), lambda i: (0, i, 0, 0)),
            pl.BlockSpec((BB, S, 1), lambda i: (i, 0, 0)),
            pl.BlockSpec((2 * H, CP), lambda i: (0, 0)),   # constant -> resident
            pl.BlockSpec((1, CP), lambda i: (0, 0)),
        ],
        # (G, BB, CP) output with a squeezed leading dim: the stored block is
        # (BB, CP) — lane-dense and legal for any BB (sublane dim == full dim).
        out_specs=pl.BlockSpec((None, BB, CP), lambda i: (i, 0, 0)),
    )

    logp_pad = pl.pallas_call(
        functools.partial(bag_head_kernel, use_mxu=use_mxu),
        out_shape=jax.ShapeDtypeStruct((G, BB, CP), jnp.float32),
        grid_spec=grid_spec,
        compiler_params=pltpu.CompilerParams(
            dimension_semantics=("parallel",),
            vmem_limit_bytes=budget),
    )(full_output, masks, pen, w_pad, b_pad)

    logp = logp_pad.reshape(B, CP)[:, :C]
    prob = jnp.exp(logp)                   # == F.softmax(output, dim=1)
    return logp, prob


# ----------------------------------------------------------------------------
# Synthetic, deterministic stand-in for the BERT encoder (plain JAX glue)
# ----------------------------------------------------------------------------
def synthetic_bert(token_ids, pad_mask, embed_table, pos_emb, enc_w, enc_b,
                   *, out_dtype=jnp.bfloat16):
    """token_ids: (N, L) int32 ; pad_mask: (N, L) f32.
       Returns (sequence_output (N, L, H) in out_dtype, pooled_output (N, H)).
       The bf16 cast is fused into the tanh epilogue so no standalone cast pass
       over the big tensor is needed downstream."""
    x = embed_table[token_ids] + pos_emb[None, :, :]
    x = x * pad_mask[..., None]
    seq_out = jnp.tanh(jnp.einsum("nlh,hk->nlk", x, enc_w) + enc_b).astype(out_dtype)
    pooled = jnp.tanh(seq_out[:, 0, :].astype(jnp.float32))  # unused downstream
    return seq_out, pooled


def reference_head(full_output, e1_mask, e2_mask, sentence_mask, w_cls_t, b_cls):
    """Pure-JAX transcription of the PyTorch forward (post-BERT) for checking."""
    e1_avg = (full_output * e1_mask[..., None].astype(jnp.float32)).mean(axis=-2)
    e2_avg = (full_output * e2_mask[..., None].astype(jnp.float32)).mean(axis=-2)
    rel = jnp.concatenate([e1_avg, e2_avg], axis=-1)
    rel = rel + (1.0 - sentence_mask)[..., None] * (-100000000.0)
    rel = jnp.max(rel, axis=-2)
    logits = rel @ w_cls_t + b_cls
    return jax.nn.log_softmax(logits, axis=-1), jax.nn.softmax(logits, axis=1)


# ----------------------------------------------------------------------------
if __name__ == "__main__":
    # bags, sentences/bag, seq len, hidden, classes, vocab
    B, S, L, H, C, VOCAB = 16, 3, 8, 32, 5, 100

    key = jax.random.PRNGKey(0)
    keys = jax.random.split(key, 10)

    # --- deterministic parameters ---
    embed_table = 0.02 * jax.random.normal(keys[0], (VOCAB, H), jnp.float32)
    pos_emb = 0.02 * jax.random.normal(keys[1], (L, H), jnp.float32)
    enc_w = 0.1 * jax.random.normal(keys[2], (H, H), jnp.float32)
    enc_b = jnp.zeros((H,), jnp.float32)

    # fc_class: nn.Linear(2H, C), kaiming_uniform_ weight, default bias init.
    fan_in = 2 * H
    w_bound = (6.0 / fan_in) ** 0.5
    b_bound = 1.0 / (fan_in ** 0.5)
    w_cls = jax.random.uniform(keys[3], (C, 2 * H), jnp.float32, -w_bound, w_bound)
    b_cls = jax.random.uniform(keys[4], (C,), jnp.float32, -b_bound, b_bound)
    w_cls_t = w_cls.T  # (2H, C)

    # --- deterministic example batch ---
    x_ids = jax.random.randint(keys[5], (B, S, L), 0, VOCAB, jnp.int32)
    pad_mask = (jax.random.uniform(keys[6], (B, S, L)) > 0.2).astype(jnp.float32)
    pad_mask = pad_mask.at[..., 0].set(1.0)   # CLS position always present
    e1_mask = (jax.random.uniform(keys[7], (B, S, L)) > 0.7).astype(jnp.float32)
    e2_mask = (jax.random.uniform(keys[8], (B, S, L)) > 0.7).astype(jnp.float32)
    sentence_mask = (jax.random.uniform(keys[9], (B, S)) > 0.4).astype(jnp.float32)
    sentence_mask = sentence_mask.at[:, 0].set(1.0)   # >= 1 live sentence per bag

    # --- forward ---
    x_flat = x_ids.reshape(B * S, L)
    pad_flat = pad_mask.reshape(B * S, L)
    seq_out, _pooled = synthetic_bert(x_flat, pad_flat, embed_table, pos_emb,
                                      enc_w, enc_b)        # bf16 sequence output
    full_output = seq_out.reshape(B, S, L, H)               # (B,S,L,H) bf16

    logp, prob = bag_attention_head(full_output, e1_mask, e2_mask,
                                    sentence_mask, w_cls_t, b_cls)
    jax.block_until_ready((logp, prob))

    # --- check against pure-JAX reference of the PyTorch math ---
    # The encoder emits bf16, so compare against the same (rounded) activations.
    full_q = full_output.astype(jnp.float32)
    ref_logp, ref_prob = reference_head(full_q, e1_mask, e2_mask,
                                        sentence_mask, w_cls_t, b_cls)
    assert jnp.allclose(logp, ref_logp, atol=2e-4, rtol=2e-4), "log_softmax mismatch"
    assert jnp.allclose(prob, ref_prob, atol=2e-5, rtol=2e-4), "softmax mismatch"

    print("KERNEL_OK")
</pallas_src>

<mosaic_0001>
module attributes {stable_mosaic.version = 11 : i64} {
  func.func @bag_head_kernel(%arg0: i32, %arg1: memref<2x3x8x32xbf16, #tpu.memory_space<vmem>>, %arg2: memref<2x2x3x8xbf16, #tpu.memory_space<vmem>>, %arg3: memref<2x3x1xf32, #tpu.memory_space<vmem>>, %arg4: memref<64x128xf32, #tpu.memory_space<vmem>>, %arg5: memref<1x128xf32, #tpu.memory_space<vmem>>, %arg6: memref<1x2x128xf32, #tpu.memory_space<vmem>>) attributes {dimension_semantics = [#tpu.dimension_semantics<parallel>], iteration_bounds = array<i64: 8>, scalar_prefetch = 0 : i64, scratch_operands = 0 : i64, tpu.core_type = #tpu.core_type<tc>, window_params = [{transform_indices = @transform_0, window_bounds = array<i64: 2, 3, 8, 32>}, {transform_indices = @transform_1, window_bounds = array<i64: 2, 2, 3, 8>}, {transform_indices = @transform_2, window_bounds = array<i64: 2, 3, 1>}, {pipeline_mode = #tpu.pipeline_mode<synchronous>, transform_indices = @transform_3, window_bounds = array<i64: 64, 128>}, {pipeline_mode = #tpu.pipeline_mode<synchronous>, transform_indices = @transform_4, window_bounds = array<i64: 1, 128>}, {transform_indices = @transform_5, window_bounds = array<i64: 1, 2, 128>}]} {
    %c0 = arith.constant 0 : index
    %c0_0 = arith.constant 0 : index
    %c0_1 = arith.constant 0 : index
    %c0_2 = arith.constant 0 : index
    %0 = vector.load %arg1[%c0, %c0_0, %c0_1, %c0_2] : memref<2x3x8x32xbf16, #tpu.memory_space<vmem>>, vector<2x3x8x32xbf16>
    %c0_3 = arith.constant 0 : index
    %c0_4 = arith.constant 0 : index
    %c0_5 = arith.constant 0 : index
    %c0_6 = arith.constant 0 : index
    %1 = vector.load %arg2[%c0_3, %c0_4, %c0_5, %c0_6] : memref<2x2x3x8xbf16, #tpu.memory_space<vmem>>, vector<2x2x3x8xbf16>
    %2 = vector.extract_strided_slice %1 {offsets = [0, 0, 0, 0], sizes = [1, 2, 3, 8], strides = [1, 1, 1, 1]} : vector<2x2x3x8xbf16> to vector<1x2x3x8xbf16>
    %3 = vector.shape_cast %2 : vector<1x2x3x8xbf16> to vector<2x3x8xbf16>
    %4 = vector.extract_strided_slice %1 {offsets = [1, 0, 0, 0], sizes = [1, 2, 3, 8], strides = [1, 1, 1, 1]} : vector<2x2x3x8xbf16> to vector<1x2x3x8xbf16>
    %5 = vector.shape_cast %4 : vector<1x2x3x8xbf16> to vector<2x3x8xbf16>
    %6 = arith.extf %0 : vector<2x3x8x32xbf16> to vector<2x3x8x32xf32>
    %7 = arith.extf %3 : vector<2x3x8xbf16> to vector<2x3x8xf32>
    %8 = vector.shape_cast %7 : vector<2x3x8xf32> to vector<2x3x8x1xf32>
    %9 = vector.broadcast %8 : vector<2x3x8x1xf32> to vector<2x3x8x32xf32>
    %10 = arith.mulf %9, %6 : vector<2x3x8x32xf32>
    %cst = arith.constant dense<0.000000e+00> : vector<2x3x32xf32>
    %11 = vector.multi_reduction <add>, %10, %cst [2] : vector<2x3x8x32xf32> to vector<2x3x32xf32>
    %cst_7 = arith.constant 1.250000e-01 : f32
    %12 = vector.broadcast %cst_7 : f32 to vector<2x3x32xf32>
    %13 = arith.mulf %11, %12 : vector<2x3x32xf32>
    %14 = arith.extf %5 : vector<2x3x8xbf16> to vector<2x3x8xf32>
    %15 = vector.shape_cast %14 : vector<2x3x8xf32> to vector<2x3x8x1xf32>
    %16 = vector.broadcast %15 : vector<2x3x8x1xf32> to vector<2x3x8x32xf32>
    %17 = arith.mulf %16, %6 : vector<2x3x8x32xf32>
    %cst_8 = arith.constant dense<0.000000e+00> : vector<2x3x32xf32>
    %18 = vector.multi_reduction <add>, %17, %cst_8 [2] : vector<2x3x8x32xf32> to vector<2x3x32xf32>
    %cst_9 = arith.constant 1.250000e-01 : f32
    %19 = vector.broadcast %cst_9 : f32 to vector<2x3x32xf32>
    %20 = arith.mulf %18, %19 : vector<2x3x32xf32>
    %c0_10 = arith.constant 0 : index
    %c0_11 = arith.constant 0 : index
    %c0_12 = arith.constant 0 : index
    %21 = vector.load %arg3[%c0_10, %c0_11, %c0_12] : memref<2x3x1xf32, #tpu.memory_space<vmem>>, vector<2x3x1xf32>
    %22 = vector.broadcast %21 : vector<2x3x1xf32> to vector<2x3x32xf32>
    %23 = arith.addf %13, %22 : vector<2x3x32xf32>
    %cst_13 = arith.constant dense<0xFF800000> : vector<2x32xf32>
    %24 = vector.multi_reduction <maximumf>, %23, %cst_13 [1] : vector<2x3x32xf32> to vector<2x32xf32>
    %25 = vector.broadcast %21 : vector<2x3x1xf32> to vector<2x3x32xf32>
    %26 = arith.addf %20, %25 : vector<2x3x32xf32>
    %cst_14 = arith.constant dense<0xFF800000> : vector<2x32xf32>
    %27 = vector.multi_reduction <maximumf>, %26, %cst_14 [1] : vector<2x3x32xf32> to vector<2x32xf32>
    %c0_15 = arith.constant 0 : index
    %c0_16 = arith.constant 0 : index
    %28 = vector.load %arg4[%c0_15, %c0_16] : memref<64x128xf32, #tpu.memory_space<vmem>>, vector<32x128xf32>
    %cst_17 = arith.constant dense<0.000000e+00> : vector<2x128xf32>
    %29 = tpu.matmul %24, %28, %cst_17 {dimension_numbers = #tpu.dot_dimension_numbers<[1], [0], [0], [1], [0, 0, 1, 1], [], []>} : vector<2x32xf32>, vector<32x128xf32>, vector<2x128xf32> -> vector<2x128xf32>
    %c32 = arith.constant 32 : index
    %c0_18 = arith.constant 0 : index
    %30 = vector.load %arg4[%c32, %c0_18] : memref<64x128xf32, #tpu.memory_space<vmem>>, vector<32x128xf32>
    %cst_19 = arith.constant dense<0.000000e+00> : vector<2x128xf32>
    %31 = tpu.matmul %27, %30, %cst_19 {dimension_numbers = #tpu.dot_dimension_numbers<[1], [0], [0], [1], [0, 0, 1, 1], [], []>} : vector<2x32xf32>, vector<32x128xf32>, vector<2x128xf32> -> vector<2x128xf32>
    %32 = arith.addf %29, %31 : vector<2x128xf32>
    %c0_20 = arith.constant 0 : index
    %c0_21 = arith.constant 0 : index
    %33 = vector.load %arg5[%c0_20, %c0_21] : memref<1x128xf32, #tpu.memory_space<vmem>>, vector<1x128xf32>
    %34 = vector.broadcast %33 : vector<1x128xf32> to vector<2x128xf32>
    %35 = arith.addf %32, %34 : vector<2x128xf32>
    %cst_22 = arith.constant dense<0xFF800000> : vector<2xf32>
    %36 = vector.multi_reduction <maximumf>, %35, %cst_22 [1] : vector<2x128xf32> to vector<2xf32>
    %37 = vector.shape_cast %36 : vector<2xf32> to vector<2x1xf32>
    %38 = vector.broadcast %37 : vector<2x1xf32> to vector<2x128xf32>
    %39 = arith.subf %35, %38 : vector<2x128xf32>
    %40 = math.exp %39 : vector<2x128xf32>
    %cst_23 = arith.constant dense<0.000000e+00> : vector<2xf32>
    %41 = vector.multi_reduction <add>, %40, %cst_23 [1] : vector<2x128xf32> to vector<2xf32>
    %42 = vector.shape_cast %41 : vector<2xf32> to vector<2x1xf32>
    %43 = math.log %42 : vector<2x1xf32>
    %44 = vector.broadcast %43 : vector<2x1xf32> to vector<2x128xf32>
    %45 = arith.subf %39, %44 : vector<2x128xf32>
    %c0_24 = arith.constant 0 : index
    %c0_25 = arith.constant 0 : index
    %c0_26 = arith.constant 0 : index
    %46 = vector.load %arg6[%c0_24, %c0_25, %c0_26] : memref<1x2x128xf32, #tpu.memory_space<vmem>>, vector<1x2x128xf32>
    %47 = vector.shape_cast %46 : vector<1x2x128xf32> to vector<2x128xf32>
    %48 = vector.shape_cast %45 : vector<2x128xf32> to vector<1x2x128xf32>
    tpu.vector_store %arg6[%c0_24, %c0_25, %c0_26], %48 {strides = array<i32>} : memref<1x2x128xf32, #tpu.memory_space<vmem>>, vector<1x2x128xf32>,
    return
  }
  func.func @transform_0(%arg0: i32) -> (i32, i32, i32, i32) {
    %c0_i32 = arith.constant 0 : i32
    %c0_i32_0 = arith.constant 0 : i32
    %c0_i32_1 = arith.constant 0 : i32
    %c0_i32_2 = arith.constant 0 : i32
    return %arg0, %c0_i32, %c0_i32_0, %c0_i32_1 : i32, i32, i32, i32
  }
  func.func @transform_1(%arg0: i32) -> (i32, i32, i32, i32) {
    %c0_i32 = arith.constant 0 : i32
    %c0_i32_0 = arith.constant 0 : i32
    %c0_i32_1 = arith.constant 0 : i32
    %c0_i32_2 = arith.constant 0 : i32
    return %c0_i32, %arg0, %c0_i32_0, %c0_i32_1 : i32, i32, i32, i32
  }
  func.func @transform_2(%arg0: i32) -> (i32, i32, i32) {
    %c0_i32 = arith.constant 0 : i32
    %c0_i32_0 = arith.constant 0 : i32
    %c0_i32_1 = arith.constant 0 : i32
    return %arg0, %c0_i32, %c0_i32_0 : i32, i32, i32
  }
  func.func @transform_3(%arg0: i32) -> (i32, i32) {
    %c0_i32 = arith.constant 0 : i32
    %c0_i32_0 = arith.constant 0 : i32
    %c0_i32_1 = arith.constant 0 : i32
    return %c0_i32, %c0_i32_0 : i32, i32
  }
  func.func @transform_4(%arg0: i32) -> (i32, i32) {
    %c0_i32 = arith.constant 0 : i32
    %c0_i32_0 = arith.constant 0 : i32
    %c0_i32_1 = arith.constant 0 : i32
    return %c0_i32, %c0_i32_0 : i32, i32
  }
  func.func @transform_5(%arg0: i32) -> (i32, i32, i32) {
    %c0_i32 = arith.constant 0 : i32
    %c0_i32_0 = arith.constant 0 : i32
    %c0_i32_1 = arith.constant 0 : i32
    return %arg0, %c0_i32, %c0_i32_0 : i32, i32, i32
  }
}

</mosaic_0001>

<llo_original>
// kernel: tpu_custom_call.1
$region0: #{tpu_custom_call.1}
  #allocation0 [shape = 'u32[]', space=smem, size = 0x4, offset = 0x4, fixed_abs, tag = 'smem constant byte address 0x4 - core index']
  #allocation1 [shape = 'u32[72,128]{1,0:T(1,128)}', space=vmem, size = 0x9000, scoped, tag = 'internal scratch']
  %s0 = inlined_call_operand.hbm [shape: bf16[16,3,8,32], index: 0, kind: input, shape index: {}]
  %s1 = inlined_call_operand.vmem [shape: bf16[2,16,3,8], index: 1, kind: input, shape index: {}]
  %s2 = inlined_call_operand.vmem [shape: f32[16,3,1], index: 2, kind: input, shape index: {}]
  %s3 = inlined_call_operand.vmem [shape: f32[64,128], index: 3, kind: input, shape index: {}]
  %s4 = inlined_call_operand.vmem [shape: f32[1,128], index: 4, kind: input, shape index: {}]
  %s5 = inlined_call_operand.hbm [shape: f32[8,2,128], index: 5, kind: output, shape index: {}]
  %s6 = sld [smem:[#allocation0]]
  $region98: #{tpu_custom_call.1} parent=0
    _
  %s8 = ssub.s32 1, %s6
  %s9 = scalar_select 0, %s8, %s6
  $region1: #{tpu_custom_call.1} parent=0
    #allocation2 [shape = 'u8[24576]{0}', space=vmem, size = 0x6000, scoped, tag = 'input window, operand 0']
    #allocation3 [shape = 's32[2]{0}', space=sflag, size = 0x8, scoped, tag = 'scoped memory for tpu_custom_call.1']
    #allocation4 [shape = 's32[2]{0}', space=sflag, size = 0x8, scoped, tag = 'scoped memory for tpu_custom_call.1']
    #allocation5 [shape = 'u8[8192]{0}', space=vmem, size = 0x2000, scoped, tag = 'input window, operand 1']
    #allocation6 [shape = 'u8[2048]{0}', space=vmem, size = 0x800, scoped, tag = 'output window, operand 0']
    %10 = vsyncpa [#allocation3], 0
    %s11 = scalar_lea.sflag [#allocation3], 1
    %12 = vsyncpa %s11, 0
    %13 = vsyncpa [#allocation4], 0
    %s14 = scalar_lea.sflag [#allocation4], 1
    %15 = vsyncpa %s14, 0
    loop: start=0, step=1, limit=10
    $region2: #{tpu_custom_call.1} parent=1 // loop_pre_header
      _
    $region3: #{tpu_custom_call.1} parent=1 // loop_header
      %s17 = sphi 0, %s21
      %p18 = scmp.ge.s32.totalorder %s17, 10
      %s27 = sphi 0, %s29
      %s30 = sphi 0, %s27
      %s31 = sphi 0, %s30
      %s47 = sphi 0, %s31
      %s53 = sphi 0, %s55
      %s56 = sphi 0, %s53
      %s57 = sphi 0, %s56
      %s73 = sphi 0, %s57
      %s79 = sphi 0, %s81
      %s82 = sphi 0, %s79
      %s83 = sphi 0, %s82
      %s99 = sphi 0, %s83
      %s103 = sphi 0, %s103
      %s105 = sphi 0, %s103
      %s106 = sphi 0, %s105
      %s120 = sphi 0, %s106
      %s124 = sphi 0, %s124
      %s126 = sphi 0, %s124
      %s127 = sphi 0, %s126
      %s141 = sphi 0, %s127
      %s147 = sphi 0, %s149
      %s150 = sphi 0, %s147
      %s151 = sphi 0, %s150
      %s167 = sphi 0, %s151
    $region4: #{tpu_custom_call.1} parent=1 // loop_header_branch
      %20 = sbr.rel (%p18) target = $region8
    $region5: #{tpu_custom_call.1} parent=1 // loop_body
      %s22 = ssub.s32 %s17, 1
      %s23 = ssub.s32 %s17, 2
      %s24 = sadd.s32 %s17, 1
      %s25 = ssub.s32 %s17, %s24
      %p26 = scmp.eq.s32.totalorder %s25, 0
      %s28 = sadd.s32 %s27, 1
      %s29 = scalar_select %p26, %s27, %s28
      %p32 = pneg %p26
      %p33 = scmp.eq.s32.totalorder %s17, 7
      %p34 = por %p32, %p33
      %p35 = scmp.ne.s32.totalorder %s27, %s30
      %p36 = scmp.eq.s32.totalorder %s17, 0
      %p37 = por %p35, %p36
      %p38 = scmp.ne.s32.totalorder %s27, %s30
      %p39 = scmp.eq.s32.totalorder %s22, 7
      %p40 = por %p38, %p39
      %p41 = scmp.ne.s32.totalorder %s30, %s31
      %p42 = scmp.eq.s32.totalorder %s22, 0
      %p43 = por %p41, %p42
      %p44 = scmp.ne.s32.totalorder %s30, %s31
      %p45 = scmp.eq.s32.totalorder %s23, 7
      %p46 = por %p44, %p45
      %p48 = scmp.ne.s32.totalorder %s31, %s47
      %p49 = scmp.eq.s32.totalorder %s23, 0
      %p50 = por %p48, %p49
      %s51 = ssub.s32 %s17, %s24
      %p52 = scmp.eq.s32.totalorder %s51, 0
      %s54 = sadd.s32 %s53, 1
      %s55 = scalar_select %p52, %s53, %s54
      %p58 = pneg %p52
      %p59 = scmp.eq.s32.totalorder %s17, 7
      %p60 = por %p58, %p59
      %p61 = scmp.ne.s32.totalorder %s53, %s56
      %p62 = scmp.eq.s32.totalorder %s17, 0
      %p63 = por %p61, %p62
      %p64 = scmp.ne.s32.totalorder %s53, %s56
      %p65 = scmp.eq.s32.totalorder %s22, 7
      %p66 = por %p64, %p65
      %p67 = scmp.ne.s32.totalorder %s56, %s57
      %p68 = scmp.eq.s32.totalorder %s22, 0
      %p69 = por %p67, %p68
      %p70 = scmp.ne.s32.totalorder %s56, %s57
      %p71 = scmp.eq.s32.totalorder %s23, 7
      %p72 = por %p70, %p71
      %p74 = scmp.ne.s32.totalorder %s57, %s73
      %p75 = scmp.eq.s32.totalorder %s23, 0
      %p76 = por %p74, %p75
      %s77 = ssub.s32 %s17, %s24
      %p78 = scmp.eq.s32.totalorder %s77, 0
      %s80 = sadd.s32 %s79, 1
      %s81 = scalar_select %p78, %s79, %s80
      %p84 = pneg %p78
      %p85 = scmp.eq.s32.totalorder %s17, 7
      %p86 = por %p84, %p85
      %p87 = scmp.ne.s32.totalorder %s79, %s82
      %p88 = scmp.eq.s32.totalorder %s17, 0
      %p89 = por %p87, %p88
      %p90 = scmp.ne.s32.totalorder %s79, %s82
      %p91 = scmp.eq.s32.totalorder %s22, 7
      %p92 = por %p90, %p91
      %p93 = scmp.ne.s32.totalorder %s82, %s83
      %p94 = scmp.eq.s32.totalorder %s22, 0
      %p95 = por %p93, %p94
      %p96 = scmp.ne.s32.totalorder %s82, %s83
      %p97 = scmp.eq.s32.totalorder %s23, 7
      %p98 = por %p96, %p97
      %p100 = scmp.ne.s32.totalorder %s83, %s99
      %p101 = scmp.eq.s32.totalorder %s23, 0
      %p102 = por %p100, %p101
      %s104 = sadd.s32 %s103, 1
      %p107 = scmp.eq.s32.totalorder %s17, 7
      %p108 = scmp.ne.s32.totalorder %s103, %s105
      %p109 = scmp.eq.s32.totalorder %s17, 0
      %p110 = por %p108, %p109
      %p111 = scmp.ne.s32.totalorder %s103, %s105
      %p112 = scmp.eq.s32.totalorder %s22, 7
      %p113 = por %p111, %p112
      %p114 = scmp.ne.s32.totalorder %s105, %s106
      %p115 = scmp.eq.s32.totalorder %s22, 0
      %p116 = por %p114, %p115
      %p117 = scmp.ne.s32.totalorder %s105, %s106
      %p118 = scmp.eq.s32.totalorder %s23, 7
      %p119 = por %p117, %p118
      %p121 = scmp.ne.s32.totalorder %s106, %s120
      %p122 = scmp.eq.s32.totalorder %s23, 0
      %p123 = por %p121, %p122
      %s125 = sadd.s32 %s124, 1
      %p128 = scmp.eq.s32.totalorder %s17, 7
      %p129 = scmp.ne.s32.totalorder %s124, %s126
      %p130 = scmp.eq.s32.totalorder %s17, 0
      %p131 = por %p129, %p130
      %p132 = scmp.ne.s32.totalorder %s124, %s126
      %p133 = scmp.eq.s32.totalorder %s22, 7
      %p134 = por %p132, %p133
      %p135 = scmp.ne.s32.totalorder %s126, %s127
      %p136 = scmp.eq.s32.totalorder %s22, 0
      %p137 = por %p135, %p136
      %p138 = scmp.ne.s32.totalorder %s126, %s127
      %p139 = scmp.eq.s32.totalorder %s23, 7
      %p140 = por %p138, %p139
      %p142 = scmp.ne.s32.totalorder %s127, %s141
      %p143 = scmp.eq.s32.totalorder %s23, 0
      %p144 = por %p142, %p143
      %s145 = ssub.s32 %s17, %s24
      %p146 = scmp.eq.s32.totalorder %s145, 0
      %s148 = sadd.s32 %s147, 1
      %s149 = scalar_select %p146, %s147, %s148
      %p152 = pneg %p146
      %p153 = scmp.eq.s32.totalorder %s17, 7
      %p154 = por %p152, %p153
      %p155 = scmp.ne.s32.totalorder %s147, %s150
      %p156 = scmp.eq.s32.totalorder %s17, 0
      %p157 = por %p155, %p156
      %p158 = scmp.ne.s32.totalorder %s147, %s150
      %p159 = scmp.eq.s32.totalorder %s22, 7
      %p160 = por %p158, %p159
      %p161 = scmp.ne.s32.totalorder %s150, %s151
      %p162 = scmp.eq.s32.totalorder %s22, 0
      %p163 = por %p161, %p162
      %p164 = scmp.ne.s32.totalorder %s150, %s151
      %p165 = scmp.eq.s32.totalorder %s23, 7
      %p166 = por %p164, %p165
      %p168 = scmp.ne.s32.totalorder %s151, %s167
      %p169 = scmp.eq.s32.totalorder %s23, 0
      %p170 = por %p168, %p169
      %p171 = scmp.le.s32.totalorder 1, %s17
      %p172 = scmp.lt.s32.totalorder %s17, 9
      %p173 = pnand %p171, %p172
      %p174 = pneg %p173
      // Predicated region
      $region9: #{tpu_custom_call.1} parent=5 // pred_check
        _
      $region10: #{tpu_custom_call.1} parent=5 // pred_check_branch
        %176 = sbr.rel (%p173) target = $region12
      $region11: #{tpu_custom_call.1} parent=5 // pred_region
        %s177 = ssub.s32 %s17, 1
        // Predicated region
        $region13: #{tpu_custom_call.1} parent=11 // pred_check
          %p178 = pneg %p116
        $region14: #{tpu_custom_call.1} parent=11 // pred_check_branch
          %180 = sbr.rel (%p178) target = $region16
        $region15: #{tpu_custom_call.1} parent=11 // pred_region
          _
        $region16: #{tpu_custom_call.1} parent=11 // pred_fallthru
          _
        // Predicated region
        $region17: #{tpu_custom_call.1} parent=11 // pred_check
          %p181 = pneg %p137
        $region18: #{tpu_custom_call.1} parent=11 // pred_check_branch
          %183 = sbr.rel (%p181) target = $region20
        $region19: #{tpu_custom_call.1} parent=11 // pred_region
          _
        $region20: #{tpu_custom_call.1} parent=11 // pred_fallthru
          _
      $region12: #{tpu_custom_call.1} parent=5 // pred_fallthru
        _
      %p184 = scmp.lt.s32.totalorder %s17, 8
      // Predicated region
      $region21: #{tpu_custom_call.1} parent=5 // pred_check
        %p185 = pneg %p184
      $region22: #{tpu_custom_call.1} parent=5 // pred_check_branch
        %187 = sbr.rel (%p185) target = $region24
      $region23: #{tpu_custom_call.1} parent=5 // pred_region
        // Predicated region
        $region25: #{tpu_custom_call.1} parent=23 // pred_check
          %p188 = pneg %p37
        $region26: #{tpu_custom_call.1} parent=23 // pred_check_branch
          %190 = sbr.rel (%p188) target = $region28
        $region27: #{tpu_custom_call.1} parent=23 // pred_region
          %s191 = sand.u32 %s27, 1
          %s192 = scalar_lea.sflag [#allocation3], %s191
          %s193 = sand.u32 %s27, 1
          %s194 = smul.addr %s193, 24
          %s195 = scalar_lea.vmem [#allocation2], %s194
          %s196 = smul.u32 2, %s17
          %198 = vsyncadd %s192, 0
          %s199 = smul.addr %s196, 3
          %s200 = smul.addr %s199, 4
          %s201 = scalar_lea.hbm %s0, %s200
          %s202 = sshll.u32 %s201, 4
          %s203 = int_to_ptr.hbm [resolvable:$true] %s202
          %s204 = sshll.u32 %s195, 4
          %s205 = int_to_ptr.vmem [resolvable:$true] %s204
          %210 = dma.hbm_to_vmem [thread:$0]  %s203, 384, %s205, %s192, 64, 64, 4
        $region28: #{tpu_custom_call.1} parent=23 // pred_fallthru
          _
        // Predicated region
        $region29: #{tpu_custom_call.1} parent=23 // pred_check
          %p211 = pneg %p63
        $region30: #{tpu_custom_call.1} parent=23 // pred_check_branch
          %213 = sbr.rel (%p211) target = $region32
        $region31: #{tpu_custom_call.1} parent=23 // pred_region
          %s214 = sand.u32 %s53, 1
          %s215 = sand.u32 %s53, 1
          %s216 = smul.addr %s215, 8
          %s217 = scalar_lea.vmem [#allocation5], %s216
          %s218 = smul.u32 2, %s17
          %s219 = smul.addr %s218, 2
          %s220 = scalar_lea.vmem %s1, %s219
          // Predicated region
          $region33: #{tpu_custom_call.1} parent=31 // pred_check
            _
          $region34: #{tpu_custom_call.1} parent=31 // pred_check_branch
            %222 = sbr.rel (0) target = $region36
          $region35: #{tpu_custom_call.1} parent=31 // pred_region
            // Predicated region
            $region37: #{tpu_custom_call.1} parent=35 // pred_check
              _
            $region38: #{tpu_custom_call.1} parent=35 // pred_check_branch
              %224 = sbr.rel target = $region40
            $region39: #{tpu_custom_call.1} parent=35 // pred_region
              // Predicated region
              $region52: #{tpu_custom_call.1} parent=39 // pred_check
                _
              $region53: #{tpu_custom_call.1} parent=39 // pred_check_branch
                %246 = sbr.rel (0) target = $region55
              $region54: #{tpu_custom_call.1} parent=39 // pred_region
                loop: start=0, step=1, limit=1
                $region56: #{tpu_custom_call.1} parent=54 // loop_pre_header
                  _
                $region57: #{tpu_custom_call.1} parent=54 // loop_header
                  %s248 = sphi 0, %s252
                  %p249 = scmp.ge.s32.totalorder %s248, 1
                  %s253 = sphi %s220, %s220
                  %s254 = sphi %s217, %s217
                $region58: #{tpu_custom_call.1} parent=54 // loop_header_branch
                  %251 = sbr.rel (%p249) target = $region62
                $region59: #{tpu_custom_call.1} parent=54 // loop_body
                  _
                $region60: #{tpu_custom_call.1} parent=54 // loop_footer
                  %s252 = sadd.s32 1, %s248
                $region61: #{tpu_custom_call.1} parent=54 // loop_footer_branch
                  %247 = sbr.rel target = $region57
                $region62: #{tpu_custom_call.1} parent=54 // loop_exit
                  _
                %s256 = ssub.s32 4, 1
                loop: start=0, step=1, limit=1
                $region63: #{tpu_custom_call.1} parent=54 // loop_pre_header
                  _
                $region64: #{tpu_custom_call.1} parent=54 // loop_header
                  %s258 = sphi 0, %s262
                  %p259 = scmp.ge.s32.totalorder %s258, 1
                  %s263 = sphi %s220, %s220
                  %s264 = sphi %s217, %s217
                $region65: #{tpu_custom_call.1} parent=54 // loop_header_branch
                  %261 = sbr.rel (%p259) target = $region69
                $region66: #{tpu_custom_call.1} parent=54 // loop_body
                  %v265 = vld [vmem:[%s263] sm:%s256]
                  %266 = vst [vmem:[%s264] sm:%s256] %v265
                  %v267 = vld [vmem:[%s263 + $0x2] sm:%s256]
                  %268 = vst [vmem:[%s264 + $0x2] sm:%s256] %v267
                  %v269 = vld [vmem:[%s263 + $0x20] sm:%s256]
                  %270 = vst [vmem:[%s264 + $0x4] sm:%s256] %v269
                  %v271 = vld [vmem:[%s263 + $0x22] sm:%s256]
                  %272 = vst [vmem:[%s264 + $0x6] sm:%s256] %v271
                $region67: #{tpu_custom_call.1} parent=54 // loop_footer
                  %s262 = sadd.s32 1, %s258
                $region68: #{tpu_custom_call.1} parent=54 // loop_footer_branch
                  %257 = sbr.rel target = $region64
                $region69: #{tpu_custom_call.1} parent=54 // loop_exit
                  _
              $region55: #{tpu_custom_call.1} parent=39 // pred_fallthru
                _
            $region40: #{tpu_custom_call.1} parent=35 // pred_fallthru
              _
            // Predicated region
            $region41: #{tpu_custom_call.1} parent=35 // pred_check
              _
            $region42: #{tpu_custom_call.1} parent=35 // pred_check_branch
              %226 = sbr.rel (0) target = $region44
            $region43: #{tpu_custom_call.1} parent=35 // pred_region
              %s228 = ssub.s32 4, 1
              loop: start=0, step=1, limit=1
              $region45: #{tpu_custom_call.1} parent=43 // loop_pre_header
                _
              $region46: #{tpu_custom_call.1} parent=43 // loop_header
                %s230 = sphi 0, %s234
                %p231 = scmp.ge.s32.totalorder %s230, 1
                %s235 = sphi %s220, %s220
                %s236 = sphi %s217, %s217
              $region47: #{tpu_custom_call.1} parent=43 // loop_header_branch
                %233 = sbr.rel (%p231) target = $region51
              $region48: #{tpu_custom_call.1} parent=43 // loop_body
                %v237 = vld [vmem:[%s235] sm:%s228]
                %238 = vst [vmem:[%s236] sm:%s228] %v237
                %v239 = vld [vmem:[%s235 + $0x2] sm:%s228]
                %240 = vst [vmem:[%s236 + $0x2] sm:%s228] %v239
                %v241 = vld [vmem:[%s235 + $0x20] sm:%s228]
                %242 = vst [vmem:[%s236 + $0x4] sm:%s228] %v241
                %v243 = vld [vmem:[%s235 + $0x22] sm:%s228]
                %244 = vst [vmem:[%s236 + $0x6] sm:%s228] %v243
              $region49: #{tpu_custom_call.1} parent=43 // loop_footer
                %s234 = sadd.s32 1, %s230
              $region50: #{tpu_custom_call.1} parent=43 // loop_footer_branch
                %229 = sbr.rel target = $region46
              $region51: #{tpu_custom_call.1} parent=43 // loop_exit
                _
            $region44: #{tpu_custom_call.1} parent=35 // pred_fallthru
              _
          $region36: #{tpu_custom_call.1} parent=31 // pred_fallthru
            _
          %273 = vnop
        $region32: #{tpu_custom_call.1} parent=23 // pred_fallthru
          _
        // Predicated region
        $region70: #{tpu_custom_call.1} parent=23 // pred_check
          %p274 = pneg %p89
        $region71: #{tpu_custom_call.1} parent=23 // pred_check_branch
          %276 = sbr.rel (%p274) target = $region73
        $region72: #{tpu_custom_call.1} parent=23 // pred_region
          %s277 = smul.u32 2, %s17
          %p278 = scmp.lt.s32.totalorder %s277, 15
          %s279 = scalar_select %p278, %s277, 15
          %s280 = smul.addr %s279, 4
          %s281 = scalar_lea.vmem %s2, %s280
          %s282 = smul.u32 2, %s17
        $region73: #{tpu_custom_call.1} parent=23 // pred_fallthru
          _
      $region24: #{tpu_custom_call.1} parent=5 // pred_fallthru
        _
      %p283 = scmp.le.s32.totalorder 1, %s17
      %p284 = scmp.lt.s32.totalorder %s17, 9
      %p285 = pnand %p283, %p284
      %p286 = pneg %p285
      // Predicated region
      $region74: #{tpu_custom_call.1} parent=5 // pred_check
        _
      $region75: #{tpu_custom_call.1} parent=5 // pred_check_branch
        %288 = sbr.rel (%p285) target = $region77
      $region76: #{tpu_custom_call.1} parent=5 // pred_region
        %s289 = ssub.s32 %s17, 1
        %s290 = sand.u32 %s30, 1
        %s291 = scalar_lea.sflag [#allocation3], %s290
        %s292 = sand.u32 %s30, 1
        %s293 = smul.addr %s292, 24
        %s294 = scalar_lea.vmem [#allocation2], %s293
        // Predicated region
        $region78: #{tpu_custom_call.1} parent=76 // pred_check
          %p295 = pneg %p43
        $region79: #{tpu_custom_call.1} parent=76 // pred_check_branch
          %297 = sbr.rel (%p295) target = $region81
        $region80: #{tpu_custom_call.1} parent=76 // pred_region
          %299 = dma.done %s291, 384
        $region81: #{tpu_custom_call.1} parent=76 // pred_fallthru
          _
        %s300 = sand.u32 %s56, 1
        %s301 = sand.u32 %s56, 1
        %s302 = smul.addr %s301, 8
        %s303 = scalar_lea.vmem [#allocation5], %s302
        // Predicated region
        $region82: #{tpu_custom_call.1} parent=76 // pred_check
          %p304 = pneg %p69
        $region83: #{tpu_custom_call.1} parent=76 // pred_check_branch
          %306 = sbr.rel (%p304) target = $region85
        $region84: #{tpu_custom_call.1} parent=76 // pred_region
          _
        $region85: #{tpu_custom_call.1} parent=76 // pred_fallthru
          _
        %s307 = sand.u32 %s30, 1
        %s308 = scalar_lea.sflag [#allocation3], %s307
        %s309 = sand.u32 %s30, 1
        %s310 = smul.addr %s309, 24
        %s311 = scalar_lea.vmem [#allocation2], %s310
        %p312 = pneg %p43
        %p313 = pneg %p40
        %s314 = sand.u32 %s56, 1
        %s315 = sand.u32 %s56, 1
        %s316 = smul.addr %s315, 8
        %s317 = scalar_lea.vmem [#allocation5], %s316
        %p318 = pneg %p69
        %p319 = pneg %p66
        %s320 = smul.u32 2, %s22
        %p321 = scmp.lt.s32.totalorder %s320, 15
        %s322 = scalar_select %p321, %s320, 15
        %s323 = smul.addr %s322, 4
        %s324 = scalar_lea.vmem %s2, %s323
        %p325 = pneg %p95
        %p326 = pneg %p92
        %p327 = pneg %p116
        %p328 = pneg %p113
        %p329 = pneg %p137
        %p330 = pneg %p134
        %p331 = pneg %p163
        %p332 = pneg %p160
        %s333 = sand.u32 %s150, 1
        %s334 = scalar_lea.sflag [#allocation4], %s333
        %s335 = sand.u32 %s150, 1
        %s336 = smul.addr %s335, 2
        %s337 = scalar_lea.vmem [#allocation6], %s336
        %s338 = smul.u32 2, %s22
        %s339 = smul.u32 2, %s22
        %s340 = smul.u32 2, %s22
        %p341 = scmp.lt.s32.totalorder %s340, 15
        %s342 = scalar_select %p341, %s340, 15
        %s343 = smul.addr %s342, 4
        %s344 = scalar_lea.vmem %s2, %s343
        %s345 = smul.u32 2, %s22
        %v346 = vld [vmem:[%s294] sm:$0xf]
        %v347 = vld [vmem:[%s294 + $0x4] sm:$0xf]
        %v348 = vld [vmem:[%s294 + $0x8] sm:$0xf]
        %v349 = vld [vmem:[%s294 + $0xc] sm:$0xf]
        %v350 = vld [vmem:[%s294 + $0x10] sm:$0xf]
        %v351 = vld [vmem:[%s294 + $0x14] sm:$0xf]
        %v352 = vld [vmem:[%s303] sm:$0x3]
        %v353 = vld [vmem:[%s303 + $0x2] sm:$0x3]
        %v354 = vld [vmem:[%s303 + $0x4] sm:$0x3]
        %v355 = vld [vmem:[%s303 + $0x6] sm:$0x3]
        %v356 = vunpack.c.l.bf16 %v346
        %v357 = vunpack.c.l.bf16 %v347
        %v358 = vunpack.c.l.bf16 %v348
        %v359 = vunpack.c.l.bf16 %v349
        %v360 = vunpack.c.l.bf16 %v350
        %v361 = vunpack.c.l.bf16 %v351
        %v362 = vunpack.c.l.bf16 %v352
        %v363 = vunpack.c.l.bf16 %v353
        %v364 = vperm.slane %v362, 0
        %v365 = vlaneseq
        %v366 = vshrl.u32 %v365, 7
        %368 = vset.pattern.permute.xlu0 %v366
        %369 = vperm.xlu0 %368, %v364
        %v370 = vpop.permute.xlu0 %369
        %v371 = vperm.slane %v362, 1
        %v372 = vlaneseq
        %v373 = vshrl.u32 %v372, 7
        %375 = vset.pattern.permute.xlu0 %v373
        %376 = vperm.xlu0 %375, %v371
        %v377 = vpop.permute.xlu0 %376
        %v378 = vperm.slane %v362, 2
        %v379 = vlaneseq
        %v380 = vshrl.u32 %v379, 7
        %382 = vset.pattern.permute.xlu0 %v380
        %383 = vperm.xlu0 %382, %v378
        %v384 = vpop.permute.xlu0 %383
        %v385 = vperm.slane %v363, 0
        %v386 = vlaneseq
        %v387 = vshrl.u32 %v386, 7
        %389 = vset.pattern.permute.xlu0 %v387
        %390 = vperm.xlu0 %389, %v385
        %v391 = vpop.permute.xlu0 %390
        %v392 = vperm.slane %v363, 1
        %v393 = vlaneseq
        %v394 = vshrl.u32 %v393, 7
        %396 = vset.pattern.permute.xlu0 %v394
        %397 = vperm.xlu0 %396, %v392
        %v398 = vpop.permute.xlu0 %397
        %v399 = vperm.slane %v363, 2
        %v400 = vlaneseq
        %v401 = vshrl.u32 %v400, 7
        %403 = vset.pattern.permute.xlu0 %v401
        %404 = vperm.xlu0 %403, %v399
        %v405 = vpop.permute.xlu0 %404
        %v406 = vmul.f32 %v370, %v356
        %v407 = vmul.f32 %v377, %v357
        %v408 = vmul.f32 %v384, %v358
        %v409 = vmul.f32 %v391, %v359
        %v410 = vmul.f32 %v398, %v360
        %v411 = vmul.f32 %v405, %v361
        %vm412 = vcmask 261120
        %v413 = vsel %vm412, %v406, 0.0
        %v414 = vrot.slane %v413, 4
        %v415 = vadd.f32 %v413, %v414
        %v416 = vrot.slane %v415, 2
        %v417 = vadd.f32 %v415, %v416
        %v418 = vrot.slane %v417, 1
        %v419 = vadd.f32 %v417, %v418
        %v420 = vsel %vm412, %v407, 0.0
        %v421 = vrot.slane %v420, 4
        %v422 = vadd.f32 %v420, %v421
        %v423 = vrot.slane %v422, 2
        %v424 = vadd.f32 %v422, %v423
        %v425 = vrot.slane %v424, 1
        %v426 = vadd.f32 %v424, %v425
        %v427 = vsel %vm412, %v408, 0.0
        %v428 = vrot.slane %v427, 4
        %v429 = vadd.f32 %v427, %v428
        %v430 = vrot.slane %v429, 2
        %v431 = vadd.f32 %v429, %v430
        %v432 = vrot.slane %v431, 1
        %v433 = vadd.f32 %v431, %v432
        %v434 = vsel %vm412, %v409, 0.0
        %v435 = vrot.slane %v434, 4
        %v436 = vadd.f32 %v434, %v435
        %v437 = vrot.slane %v436, 2
        %v438 = vadd.f32 %v436, %v437
        %v439 = vrot.slane %v438, 1
        %v440 = vadd.f32 %v438, %v439
        %v441 = vsel %vm412, %v410, 0.0
        %v442 = vrot.slane %v441, 4
        %v443 = vadd.f32 %v441, %v442
        %v444 = vrot.slane %v443, 2
        %v445 = vadd.f32 %v443, %v444
        %v446 = vrot.slane %v445, 1
        %v447 = vadd.f32 %v445, %v446
        %v448 = vsel %vm412, %v411, 0.0
        %v449 = vrot.slane %v448, 4
        %v450 = vadd.f32 %v448, %v449
        %v451 = vrot.slane %v450, 2
        %v452 = vadd.f32 %v450, %v451
        %v453 = vrot.slane %v452, 1
        %v454 = vadd.f32 %v452, %v453
        %v455 = vmul.f32 %v419, 0.125
        %v456 = vmul.f32 %v426, 0.125
        %v457 = vmul.f32 %v433, 0.125
        %v458 = vmul.f32 %v440, 0.125
        %v459 = vmul.f32 %v447, 0.125
        %v460 = vmul.f32 %v454, 0.125
        %v461 = vunpack.c.l.bf16 %v354
        %v462 = vunpack.c.l.bf16 %v355
        %v463 = vperm.slane %v461, 0
        %v464 = vlaneseq
        %v465 = vshrl.u32 %v464, 7
        %467 = vset.pattern.permute.xlu0 %v465
        %468 = vperm.xlu0 %467, %v463
        %v469 = vpop.permute.xlu0 %468
        %v470 = vperm.slane %v461, 1
        %v471 = vlaneseq
        %v472 = vshrl.u32 %v471, 7
        %474 = vset.pattern.permute.xlu0 %v472
        %475 = vperm.xlu0 %474, %v470
        %v476 = vpop.permute.xlu0 %475
        %v477 = vperm.slane %v461, 2
        %v478 = vlaneseq
        %v479 = vshrl.u32 %v478, 7
        %481 = vset.pattern.permute.xlu0 %v479
        %482 = vperm.xlu0 %481, %v477
        %v483 = vpop.permute.xlu0 %482
        %v484 = vperm.slane %v462, 0
        %v485 = vlaneseq
        %v486 = vshrl.u32 %v485, 7
        %488 = vset.pattern.permute.xlu0 %v486
        %489 = vperm.xlu0 %488, %v484
        %v490 = vpop.permute.xlu0 %489
        %v491 = vperm.slane %v462, 1
        %v492 = vlaneseq
        %v493 = vshrl.u32 %v492, 7
        %495 = vset.pattern.permute.xlu0 %v493
        %496 = vperm.xlu0 %495, %v491
        %v497 = vpop.permute.xlu0 %496
        %v498 = vperm.slane %v462, 2
        %v499 = vlaneseq
        %v500 = vshrl.u32 %v499, 7
        %502 = vset.pattern.permute.xlu0 %v500
        %503 = vperm.xlu0 %502, %v498
        %v504 = vpop.permute.xlu0 %503
        %v505 = vmul.f32 %v469, %v356
        %v506 = vmul.f32 %v476, %v357
        %v507 = vmul.f32 %v483, %v358
        %v508 = vmul.f32 %v490, %v359
        %v509 = vmul.f32 %v497, %v360
        %v510 = vmul.f32 %v504, %v361
        %v511 = vsel %vm412, %v505, 0.0
        %v512 = vrot.slane %v511, 4
        %v513 = vadd.f32 %v511, %v512
        %v514 = vrot.slane %v513, 2
        %v515 = vadd.f32 %v513, %v514
        %v516 = vrot.slane %v515, 1
        %v517 = vadd.f32 %v515, %v516
        %v518 = vsel %vm412, %v506, 0.0
        %v519 = vrot.slane %v518, 4
        %v520 = vadd.f32 %v518, %v519
        %v521 = vrot.slane %v520, 2
        %v522 = vadd.f32 %v520, %v521
        %v523 = vrot.slane %v522, 1
        %v524 = vadd.f32 %v522, %v523
        %v525 = vsel %vm412, %v507, 0.0
        %v526 = vrot.slane %v525, 4
        %v527 = vadd.f32 %v525, %v526
        %v528 = vrot.slane %v527, 2
        %v529 = vadd.f32 %v527, %v528
        %v530 = vrot.slane %v529, 1
        %v531 = vadd.f32 %v529, %v530
        %v532 = vsel %vm412, %v508, 0.0
        %v533 = vrot.slane %v532, 4
        %v534 = vadd.f32 %v532, %v533
        %v535 = vrot.slane %v534, 2
        %v536 = vadd.f32 %v534, %v535
        %v537 = vrot.slane %v536, 1
        %v538 = vadd.f32 %v536, %v537
        %v539 = vsel %vm412, %v509, 0.0
        %v540 = vrot.slane %v539, 4
        %v541 = vadd.f32 %v539, %v540
        %v542 = vrot.slane %v541, 2
        %v543 = vadd.f32 %v541, %v542
        %v544 = vrot.slane %v543, 1
        %v545 = vadd.f32 %v543, %v544
        %v546 = vsel %vm412, %v510, 0.0
        %v547 = vrot.slane %v546, 4
        %v548 = vadd.f32 %v546, %v547
        %v549 = vrot.slane %v548, 2
        %v550 = vadd.f32 %v548, %v549
        %v551 = vrot.slane %v550, 1
        %v552 = vadd.f32 %v550, %v551
        %v553 = vmul.f32 %v517, 0.125
        %v554 = vmul.f32 %v524, 0.125
        %v555 = vmul.f32 %v531, 0.125
        %v556 = vmul.f32 %v538, 0.125
        %v557 = vmul.f32 %v545, 0.125
        %v558 = vmul.f32 %v552, 0.125
        %v559 = vld [vmem:[%s344] sm:$0x7]
        %v560 = vld [vmem:[%s344 + $0x4] sm:$0x7]
        %562 = vset.pattern.permute.xlu0 0
        %563 = vperm.xlu0 %562, %v559
        %v564 = vpop.permute.xlu0 %563
        %566 = vset.pattern.permute.xlu0 0
        %567 = vperm.xlu0 %566, %v560
        %v568 = vpop.permute.xlu0 %567
        %v569 = vrot.slane %v564, 1
        %v570 = vrot.slane %v564, 2
        %v571 = vrot.slane %v568, 1
        %v572 = vrot.slane %v568, 2
        %v579 = vadd.f32 %v455, %v564
        %v580 = vadd.f32 %v456, %v569
        %v581 = vadd.f32 %v457, %v570
        %v582 = vadd.f32 %v458, %v568
        %v583 = vadd.f32 %v459, %v571
        %v584 = vadd.f32 %v460, %v572
        %vm585 = vcmask 253952
        %v586 = vsel %vm585, %v579, -inf
        %v587 = vsel %vm585, %v580, -inf
        %v588 = vsel %vm585, %v581, -inf
        %v589 = vmax.f32 %v586, %v588
        %v590 = vmax.f32 %v589, %v587
        %v591 = vsel %vm585, %v582, -inf
        %v592 = vsel %vm585, %v583, -inf
        %v593 = vsel %vm585, %v584, -inf
        %v594 = vmax.f32 %v591, %v593
        %v595 = vmax.f32 %v594, %v592
        %v596 = vadd.f32 %v553, %v564
        %v597 = vadd.f32 %v554, %v569
        %v598 = vadd.f32 %v555, %v570
        %v599 = vadd.f32 %v556, %v568
        %v600 = vadd.f32 %v557, %v571
        %v601 = vadd.f32 %v558, %v572
        %v602 = vsel %vm585, %v596, -inf
        %v603 = vsel %vm585, %v597, -inf
        %v604 = vsel %vm585, %v598, -inf
        %v605 = vmax.f32 %v602, %v604
        %v606 = vmax.f32 %v605, %v603
        %v607 = vsel %vm585, %v599, -inf
        %v608 = vsel %vm585, %v600, -inf
        %v609 = vsel %vm585, %v601, -inf
        %v610 = vmax.f32 %v607, %v609
        %v611 = vmax.f32 %v610, %v608
        %v612 = vld [vmem:[%s3] sm:$0xff]
        %v613 = vld [vmem:[%s3 + $0x8] sm:$0xff]
        %v614 = vld [vmem:[%s3 + $0x10] sm:$0xff]
        %v615 = vld [vmem:[%s3 + $0x18] sm:$0xff]
        %v616 = vld [vmem:[%s3 + $0x20] sm:$0xff]
        %v617 = vld [vmem:[%s3 + $0x28] sm:$0xff]
        %v618 = vld [vmem:[%s3 + $0x30] sm:$0xff]
        %v619 = vld [vmem:[%s3 + $0x38] sm:$0xff]
        %v622 = vrot.slane %v611, 7
        %vm623 = vcmask 1041409
        %v624 = vsel %vm623, %v622, %v606
        %v625 = vsel %vm412, %v624, 0
        %627 = vmatpush.msra.mxu0 0.0
        %628 = vmatpush.msra.mxu0 0.0
        %629 = vmatpush.msra.mxu0 0.0
        %630 = vmatpush.msra.mxu0 0.0
        %631 = vmatpush.msra.mxu0 0.0
        %632 = vmatpush.msra.mxu0 0.0
        %633 = vmatpush.msra.mxu0 0.0
        %634 = vmatpush.msra.mxu0 0.0
        %635 = vmatpush.msra.mxu0 0.0
        %636 = vmatpush.msra.mxu0 0.0
        %637 = vmatpush.msra.mxu0 0.0
        %638 = vmatpush.msra.mxu0 0.0
        %639 = vmatpush.msra.mxu0 %v619
        %640 = vmatpush.msra.mxu0 %v618
        %641 = vmatpush.msra.mxu0 %v617
        %642 = vmatpush.msra.mxu0 %v616
        %643 = vmatmul.f32.gmra.mxu0 %v625
        %v644 = vpop.f32.mrf.mxu0
        %v645 = vadd.f32 0.0, %v644
        %646 = vdwg.mxu0
        %v649 = vrot.slane %v595, 7
        %v650 = vsel %vm623, %v649, %v590
        %v651 = vsel %vm412, %v650, 0
        %653 = vmatpush.msra.mxu0 0.0
        %654 = vmatpush.msra.mxu0 0.0
        %655 = vmatpush.msra.mxu0 0.0
        %656 = vmatpush.msra.mxu0 0.0
        %657 = vmatpush.msra.mxu0 0.0
        %658 = vmatpush.msra.mxu0 0.0
        %659 = vmatpush.msra.mxu0 0.0
        %660 = vmatpush.msra.mxu0 0.0
        %661 = vmatpush.msra.mxu0 0.0
        %662 = vmatpush.msra.mxu0 0.0
        %663 = vmatpush.msra.mxu0 0.0
        %664 = vmatpush.msra.mxu0 0.0
        %665 = vmatpush.msra.mxu0 %v615
        %666 = vmatpush.msra.mxu0 %v614
        %667 = vmatpush.msra.mxu0 %v613
        %668 = vmatpush.msra.mxu0 %v612
        %669 = vmatmul.f32.gmra.mxu0 %v651
        %v670 = vpop.f32.mrf.mxu0
        %v671 = vadd.f32 %v645, %v670
        %672 = vdwg.mxu0
        %v673 = vld [vmem:[%s4] sm:$0x1]
        %v675 = vperm.slane %v673, 0
        %v677 = vadd.f32 %v671, %v675
        %vm678 = vcmask 1041408
        %v679 = vsel %vm678, %v677, -inf
        %680 = vmax.xlane.f32.xlu0 %v679
        %v681 = vpop.xlane.xlu0 %680
        %v682 = vsub.f32 %v677, %v681
        %v683 = vmul.f32 %v682, 1.442695
        %v684 = vpow.pop %v683
        %v685 = vsel %vm678, %v684, 0.0
        %686 = vadd.xlane.f32.xlu0 %v685
        %v687 = vpop.xlane.xlu0 %686
        %v688 = vlog2.pop %v687
        %v689 = vmul.f32 %v688, 0.6931472
        %v690 = vsub.f32 %v682, %v689
        %691 = vst [vmem:[%s337] sm:$0x3] %v690
        %s692 = sand.u32 %s150, 1
        %s693 = scalar_lea.sflag [#allocation4], %s692
        %s694 = sand.u32 %s150, 1
        %s695 = smul.addr %s694, 2
        %s696 = scalar_lea.vmem [#allocation6], %s695
        // Predicated region
        $region86: #{tpu_custom_call.1} parent=76 // pred_check
          %p697 = pneg %p160
        $region87: #{tpu_custom_call.1} parent=76 // pred_check_branch
          %699 = sbr.rel (%p697) target = $region89
        $region88: #{tpu_custom_call.1} parent=76 // pred_region
          %701 = vsyncadd %s693, 0
          %s702 = smul.addr %s22, 2
          %s703 = scalar_lea.hbm %s5, %s702
          %s705 = sshll.u32 %s696, 4
          %s706 = int_to_ptr.vmem [resolvable:$true] %s705
          %s707 = sshll.u32 %s703, 4
          %s708 = int_to_ptr.hbm [resolvable:$true] %s707
          %710 = dma.vmem_to_hbm [thread:$0]  %s706, 32, %s708, %s693
        $region89: #{tpu_custom_call.1} parent=76 // pred_fallthru
          _
      $region77: #{tpu_custom_call.1} parent=5 // pred_fallthru
        _
      %p711 = scmp.le.s32.totalorder 2, %s17
      // Predicated region
      $region90: #{tpu_custom_call.1} parent=5 // pred_check
        %p712 = pneg %p711
      $region91: #{tpu_custom_call.1} parent=5 // pred_check_branch
        %714 = sbr.rel (%p712) target = $region93
      $region92: #{tpu_custom_call.1} parent=5 // pred_region
        %s715 = ssub.s32 %s17, 2
        // Predicated region
        $region94: #{tpu_custom_call.1} parent=92 // pred_check
          %p716 = pneg %p166
        $region95: #{tpu_custom_call.1} parent=92 // pred_check_branch
          %718 = sbr.rel (%p716) target = $region97
        $region96: #{tpu_custom_call.1} parent=92 // pred_region
          %s719 = sand.u32 %s151, 1
          %s720 = scalar_lea.sflag [#allocation4], %s719
          %s721 = sand.u32 %s151, 1
          %s722 = smul.addr %s721, 2
          %s723 = scalar_lea.vmem [#allocation6], %s722
          %725 = dma.done %s720, 32
        $region97: #{tpu_custom_call.1} parent=92 // pred_fallthru
          _
      $region93: #{tpu_custom_call.1} parent=5 // pred_fallthru
        _
    $region6: #{tpu_custom_call.1} parent=1 // loop_footer
      %s21 = sadd.s32 1, %s17
    $region7: #{tpu_custom_call.1} parent=1 // loop_footer_branch
      %16 = sbr.rel target = $region3
    $region8: #{tpu_custom_call.1} parent=1 // loop_exit
      _
    %726 = vsyncpa [#allocation3], 1
    %s727 = scalar_lea.sflag [#allocation3], 1
    %728 = vsyncpa %s727, 1
    %729 = vsyncpa [#allocation4], 1
    %s730 = scalar_lea.sflag [#allocation4], 1
    %731 = vsyncpa %s730, 1

</llo_original>
